<compile_context>
chip_gen: v7x
topology: tpu7x:2x2x1
jax: 0.10.0
libtpu: 0.0.40
codegen_flags: <defaults>
</compile_context>

<pallas_src>
import functools

import jax
import jax.numpy as jnp
from jax.experimental import pallas as pl
from jax.experimental.pallas import tpu as pltpu


def _act_quant_kernel(scales_ref, x_ref, o_ref, *, bits, signed):
    # scales_ref: (2,) f32 in SMEM (scalar-prefetched): [alpha, 1/alpha]
    # x_ref / o_ref: (tile_rows, lanes) tiles in VMEM, in the caller's dtype.
    levels = float(2 ** bits - 1)        # Python constants
    inv_levels = 1.0 / levels
    alpha = scales_ref[0]
    inv_alpha = scales_ref[1]

    # Compute in f32 regardless of I/O dtype; same op order as the reference.
    y = x_ref[...].astype(jnp.float32) * inv_alpha
    if signed:
        y = jnp.clip(y, -1.0, 1.0)
    else:
        # PyTorch clamp(max=1): no lower bound in the unsigned path.
        y = jnp.minimum(y, 1.0)
    yq = jnp.round(y * levels) * inv_levels
    o_ref[...] = (yq * alpha).astype(o_ref.dtype)


# Wide, lane-dense last-dim candidates (all multiples of 128).
_LANE_CANDIDATES = (2048, 1024, 512, 256, 128)
_TARGET_BLOCK_BYTES = 8 * 1024 * 1024     # per buffer; 4 buffers ~= 32 MiB
_MIN_SPLIT_BYTES = 1 * 1024 * 1024        # force >=2 grid steps above this
_MAX_SINGLE_BLOCK_ELEMS = 1 << 20         # ragged fallback: one full block
_VMEM_LIMIT_BYTES = 48 * 1024 * 1024


def _sublane_multiple(itemsize):
    # f32 -> 8 sublanes, bf16/f16 -> 16 (packed pairs), int8/fp8 -> 32.
    return {4: 8, 2: 16, 1: 32}.get(itemsize, 8)


def act_quantize_forward(x, alpha, *, bit_a=4, signed=False):
    """Forward pass of act_quantize_fn.

    x: float array (e.g. NCHW conv activation), any float dtype.
    alpha: scalar float parameter (a_alpha).  Assumed > 0 (as in training).
    """
    bits = bit_a - 1 if signed else bit_a
    assert bits > 0

    orig_shape = x.shape
    orig_dtype = x.dtype
    total = x.size
    itemsize = jnp.dtype(orig_dtype).itemsize

    # ---- choose a lane-dense 2-D slab (zero-copy reshape when possible) ----
    lanes = None
    for cand in _LANE_CANDIDATES:
        if total % cand == 0:
            lanes = cand
            break

    pad = 0
    if lanes is not None:
        rows = total // lanes
        x2d = x.reshape(rows, lanes)
    elif total <= _MAX_SINGLE_BLOCK_ELEMS:
        # Ragged size that is not a multiple of 128: small enough to run as a
        # single full-extent block (masked lane stores) and skip jnp.pad's
        # extra HBM pass.
        lanes = total
        rows = 1
        x2d = x.reshape(1, total)
    else:
        # Rare: huge tensor whose size is not a multiple of 128 — pay one pad.
        # TODO(synk): handle the ragged tail with a masked last block instead.
        lanes = 128
        rows = -(-total // lanes)
        pad = rows * lanes - total
        x2d = jnp.pad(x.reshape(-1), (0, pad)).reshape(rows, lanes)

    # ---- row tiling ---------------------------------------------------------
    sub = _sublane_multiple(itemsize)
    row_bytes = lanes * itemsize
    target_rows = max(sub, ((_TARGET_BLOCK_BYTES // row_bytes) // sub) * sub)
    tile_rows = min(rows, target_rows)
    total_bytes = rows * row_bytes
    if tile_rows >= rows and total_bytes > _MIN_SPLIT_BYTES and rows >= 2 * sub:
        # Guarantee >=2 grid steps so v7x's "parallel" axis feeds both
        # TensorCores; harmless on single-core v5e/v6e.
        tile_rows = -(-rows // 2)
    if tile_rows < rows:
        tile_rows = max(sub, (tile_rows // sub) * sub)   # sublane-aligned tile
    grid = (pl.cdiv(rows, tile_rows),)

    # ---- scalars (one SMEM copy before the grid) ----------------------------
    alpha_f32 = jnp.asarray(alpha, jnp.float32)
    scales = jnp.stack([alpha_f32, 1.0 / alpha_f32]).reshape(2)

    kernel = functools.partial(_act_quant_kernel, bits=bits, signed=signed)

    out2d = pl.pallas_call(
        kernel,
        out_shape=jax.ShapeDtypeStruct((rows, lanes), orig_dtype),
        grid_spec=pltpu.PrefetchScalarGridSpec(
            num_scalar_prefetch=1,
            grid=grid,
            in_specs=[
                pl.BlockSpec((tile_rows, lanes), lambda i, scales: (i, 0)),
            ],
            out_specs=pl.BlockSpec((tile_rows, lanes), lambda i, scales: (i, 0)),
        ),
        compiler_params=pltpu.CompilerParams(
            dimension_semantics=("parallel",),
            vmem_limit_bytes=_VMEM_LIMIT_BYTES,
        ),
    )(scales, x2d)

    out = out2d.reshape(-1)
    if pad:
        out = out[:total]
    return out.reshape(orig_shape)


def _reference(x, alpha, bit_a=4, signed=False):
    bits = bit_a - 1 if signed else bit_a
    levels = 2 ** bits - 1
    xf = x.astype(jnp.float32)
    xs = xf / alpha
    xc = jnp.clip(xs, -1.0, 1.0) if signed else jnp.minimum(xs, 1.0)
    xq = jnp.round(xc * levels) / levels
    return (xq * alpha).astype(x.dtype)


if __name__ == "__main__":
    key = jax.random.PRNGKey(0)
    alpha = jnp.float32(8.0)  # a_alpha initialized as in __init__

    # 1) NCHW conv activation (zero-copy wide-lane path), unsigned bit_a=4.
    x1 = jax.random.normal(key, (2, 4, 16, 16), dtype=jnp.float32) * 5.0
    y1 = jax.block_until_ready(act_quantize_forward(x1, alpha, bit_a=4, signed=False))
    r1 = _reference(x1, alpha, bit_a=4, signed=False)
    assert y1.shape == x1.shape and y1.dtype == x1.dtype
    assert jnp.allclose(y1, r1, atol=1e-5), "unsigned mismatch vs reference"

    # 2) Signed path on the same input.
    y2 = jax.block_until_ready(act_quantize_forward(x1, alpha, bit_a=4, signed=True))
    r2 = _reference(x1, alpha, bit_a=4, signed=True)
    assert jnp.allclose(y2, r2, atol=1e-5), "signed mismatch vs reference"

    # 3) bf16 activation: native-dtype I/O through the kernel (no wrapper casts).
    x3 = (jax.random.normal(jax.random.PRNGKey(1), (2, 16, 32, 32),
                            dtype=jnp.float32) * 5.0).astype(jnp.bfloat16)
    y3 = jax.block_until_ready(act_quantize_forward(x3, alpha, bit_a=4, signed=False))
    r3 = _reference(x3, alpha, bit_a=4, signed=False)
    assert y3.dtype == jnp.bfloat16 and y3.shape == x3.shape
    assert jnp.allclose(y3.astype(jnp.float32), r3.astype(jnp.float32),
                        atol=0.08), "bf16 mismatch vs reference"

    # 4) Awkward shape (not a multiple of 128): single full-extent block path.
    x4 = jax.random.normal(jax.random.PRNGKey(2), (2, 3, 5, 7), dtype=jnp.float32) * 5.0
    y4 = jax.block_until_ready(act_quantize_forward(x4, alpha, bit_a=4, signed=False))
    r4 = _reference(x4, alpha, bit_a=4, signed=False)
    assert y4.shape == x4.shape
    assert jnp.allclose(y4, r4, atol=1e-5), "ragged-path mismatch vs reference"

    # 5) Mid-size activation: exercises the multi-block (>=2 grid steps) path.
    x5 = jax.random.normal(jax.random.PRNGKey(3), (4, 32, 56, 56), dtype=jnp.float32) * 5.0
    y5 = jax.block_until_ready(act_quantize_forward(x5, alpha, bit_a=4, signed=False))
    r5 = _reference(x5, alpha, bit_a=4, signed=False)
    assert y5.shape == x5.shape
    assert jnp.allclose(y5, r5, atol=1e-5), "multi-block mismatch vs reference"

    print("KERNEL_OK")
</pallas_src>

<mosaic_0001>
module attributes {stable_mosaic.version = 11 : i64} {
  func.func @_act_quant_kernel(%arg0: i32, %arg1: memref<2xf32, #tpu.memory_space<smem>>, %arg2: memref<1x2048xf32, #tpu.memory_space<vmem>>, %arg3: memref<1x2048xf32, #tpu.memory_space<vmem>>) attributes {dimension_semantics = [#tpu.dimension_semantics<parallel>], iteration_bounds = array<i64: 1>, scalar_prefetch = 1 : i64, scratch_operands = 0 : i64, tpu.core_type = #tpu.core_type<tc>, window_params = [{transform_indices = @transform_0, window_bounds = array<i64: 1, 2048>}, {transform_indices = @transform_1, window_bounds = array<i64: 1, 2048>}]} {
    %c0 = arith.constant 0 : index
    %0 = memref.load %arg1[%c0] : memref<2xf32, #tpu.memory_space<smem>>
    %c1 = arith.constant 1 : index
    %1 = memref.load %arg1[%c1] : memref<2xf32, #tpu.memory_space<smem>>
    %c0_0 = arith.constant 0 : index
    %c0_1 = arith.constant 0 : index
    %2 = vector.load %arg2[%c0_0, %c0_1] : memref<1x2048xf32, #tpu.memory_space<vmem>>, vector<1x2048xf32>
    %3 = vector.broadcast %1 : f32 to vector<1x2048xf32>
    %4 = arith.mulf %2, %3 : vector<1x2048xf32>
    %cst = arith.constant 1.000000e+00 : f32
    %5 = vector.broadcast %cst : f32 to vector<1x2048xf32>
    %6 = arith.minimumf %4, %5 : vector<1x2048xf32>
    %cst_2 = arith.constant 1.500000e+01 : f32
    %7 = vector.broadcast %cst_2 : f32 to vector<1x2048xf32>
    %8 = arith.mulf %6, %7 : vector<1x2048xf32>
    %9 = math.roundeven %8 : vector<1x2048xf32>
    %cst_3 = arith.constant 0.0666666701 : f32
    %10 = vector.broadcast %cst_3 : f32 to vector<1x2048xf32>
    %11 = arith.mulf %9, %10 : vector<1x2048xf32>
    %12 = vector.broadcast %0 : f32 to vector<1x2048xf32>
    %13 = arith.mulf %11, %12 : vector<1x2048xf32>
    %c0_4 = arith.constant 0 : index
    %c0_5 = arith.constant 0 : index
    %14 = vector.load %arg3[%c0_4, %c0_5] : memref<1x2048xf32, #tpu.memory_space<vmem>>, vector<1x2048xf32>
    tpu.vector_store %arg3[%c0_4, %c0_5], %13 {strides = array<i32>} : memref<1x2048xf32, #tpu.memory_space<vmem>>, vector<1x2048xf32>,
    return
  }
  func.func @transform_0(%arg0: i32, %arg1: memref<2xf32, #tpu.memory_space<smem>>) -> (i32, i32) {
    %c0_i32 = arith.constant 0 : i32
    %c0_i32_0 = arith.constant 0 : i32
    return %arg0, %c0_i32 : i32, i32
  }
  func.func @transform_1(%arg0: i32, %arg1: memref<2xf32, #tpu.memory_space<smem>>) -> (i32, i32) {
    %c0_i32 = arith.constant 0 : i32
    %c0_i32_0 = arith.constant 0 : i32
    return %arg0, %c0_i32 : i32, i32
  }
}

</mosaic_0001>

<llo_original>
// kernel: tpu_custom_call.1
$region0: #{tpu_custom_call.1}
  #allocation0 [shape = 'u32[]', space=smem, size = 0x4, offset = 0x4, fixed_abs, tag = 'smem constant byte address 0x4 - core index']
  #allocation1 [shape = 'u32[144,128]{1,0:T(1,128)}', space=vmem, size = 0x12000, scoped, tag = 'internal scratch']
  #allocation2 [shape = 's32[1]{0}', space=sflag, size = 0x4, scoped, tag = 'scoped memory for tpu_custom_call.1']
  #allocation3 [shape = 'u8[512]{0}', space=smem, size = 0x200, scoped, tag = 'prefetched SMEM operand 0']
  %s0 = inlined_call_operand.hbm [shape: f32[2], index: 0, kind: input, shape index: {}]
  %s1 = inlined_call_operand.hbm [shape: f32[1,2048], index: 1, kind: input, shape index: {}]
  %s2 = inlined_call_operand.hbm [shape: f32[1,2048], index: 2, kind: output, shape index: {}]
  %s3 = sld [smem:[#allocation0]]
  $region18: #{tpu_custom_call.1} parent=0
    _
  %s5 = ssub.s32 1, %s3
  %s6 = scalar_select 0, %s5, %s3
  %8 = dma.hbm_to_smem %s0, 16, [#allocation3], [#allocation2]
  %9 = dma.done [#allocation2], 16
  %10 = sfence
  $region1: #{tpu_custom_call.1} parent=0
    #allocation4 [shape = 'u8[8192]{0}', space=vmem, size = 0x2000, scoped, tag = 'input window, operand 1, single buffered']
    #allocation5 [shape = 's32[1]{0}', space=sflag, size = 0x4, scoped, tag = 'scoped memory for tpu_custom_call.1']
    #allocation6 [shape = 's32[1]{0}', space=sflag, size = 0x4, scoped, tag = 'scoped memory for tpu_custom_call.1']
    #allocation7 [shape = 'u8[8192]{0}', space=vmem, size = 0x2000, scoped, tag = 'output window, operand 0, single buffered']
    %11 = vsyncpa [#allocation5], 0
    %12 = vsyncpa [#allocation6], 0
    // Predicated region
    $region2: #{tpu_custom_call.1} parent=1 // pred_check
      _
    $region3: #{tpu_custom_call.1} parent=1 // pred_check_branch
      %14 = sbr.rel (0) target = $region5
    $region4: #{tpu_custom_call.1} parent=1 // pred_region
      %s16 = ssub.s32 256, 256
      %17 = vsyncadd [#allocation5], %s16
      %s19 = sshll.u32 [#allocation4], 4
      %s20 = int_to_ptr.vmem [resolvable:$true] %s19
      %22 = dma.hbm_to_vmem [thread:$0]  %s1, 256, %s20, [#allocation5]
    $region5: #{tpu_custom_call.1} parent=1 // pred_fallthru
      _
    // Predicated region
    $region6: #{tpu_custom_call.1} parent=1 // pred_check
      _
    $region7: #{tpu_custom_call.1} parent=1 // pred_check_branch
      %24 = sbr.rel (0) target = $region9
    $region8: #{tpu_custom_call.1} parent=1 // pred_region
      %25 = dma.done [#allocation5], 256
    $region9: #{tpu_custom_call.1} parent=1 // pred_fallthru
      _
    %s26 = sld [smem:[#allocation3]]
    %s27 = sld [smem:[#allocation3 + $0x1]]
    %v28 = vld [vmem:[#allocation4] sm:$0xff]
    %v29 = vld [vmem:[#allocation4 + $0x8] sm:$0xff]
    %v30 = vstv %s27
    %v31 = vmul.f32 %v28, %v30
    %v32 = vmul.f32 %v29, %v30
    %v33 = vmin.f32 %v31, 1.0
    %v34 = vmin.f32 %v32, 1.0
    %v35 = vmul.f32 %v33, 15.0
    %v36 = vmul.f32 %v34, 15.0
    %v37 = vround.ne.pseudo %v35
    %v38 = vround.ne.pseudo %v36
    %v39 = vmul.f32 %v37, 0.06666667
    %v40 = vmul.f32 %v38, 0.06666667
    %v41 = vstv %s26
    %v42 = vmul.f32 %v39, %v41
    %v43 = vmul.f32 %v40, %v41
    %44 = vst [vmem:[#allocation7] sm:$0xff] %v42
    %45 = vst [vmem:[#allocation7 + $0x8] sm:$0xff] %v43
    // Predicated region
    $region10: #{tpu_custom_call.1} parent=1 // pred_check
      _
    $region11: #{tpu_custom_call.1} parent=1 // pred_check_branch
      %47 = sbr.rel (0) target = $region13
    $region12: #{tpu_custom_call.1} parent=1 // pred_region
      %s49 = ssub.s32 256, 256
      %50 = vsyncadd [#allocation6], %s49
      %s52 = sshll.u32 [#allocation7], 4
      %s53 = int_to_ptr.vmem [resolvable:$true] %s52
      %55 = dma.vmem_to_hbm [thread:$0]  %s53, 256, %s2, [#allocation6]
    $region13: #{tpu_custom_call.1} parent=1 // pred_fallthru
      _
    // Predicated region
    $region14: #{tpu_custom_call.1} parent=1 // pred_check
      _
    $region15: #{tpu_custom_call.1} parent=1 // pred_check_branch
      %57 = sbr.rel (0) target = $region17
    $region16: #{tpu_custom_call.1} parent=1 // pred_region
      %58 = dma.done [#allocation6], 256
    $region17: #{tpu_custom_call.1} parent=1 // pred_fallthru
      _
    %59 = vsyncpa [#allocation5], 1
    %60 = vsyncpa [#allocation6], 1

</llo_original>
